<compile_context>
chip_gen: v5e
topology: v5e:2x2
jax: 0.10.0
libtpu: 0.0.40
codegen_flags: <defaults>
</compile_context>

<pallas_src>
import functools

import jax
import jax.numpy as jnp
from jax.experimental import pallas as pl
from jax.experimental.pallas import tpu as pltpu


def _rule_kernel(s_ref, rand_ref, drop_ref, o_ref, *, beta, radius, H, W):
    """Whole-batch Metropolis update.

    s_ref:    (B, C, H*W)  spins in {-1, +1}, H*W flattened on the lane axis
    rand_ref: (B, C, H*W)  uniform [0,1) randoms (acceptance)
    drop_ref: (1, 1, H*W)  uniform [0,1) randoms (dropout mask, shared over B,C)
    o_ref:    (B, C, H*W)  flipped spins
    """
    HW = H * W
    s = s_ref[...]                                   # (B, C, HW)

    # Channel-reduced spin field: the nearest-neighbour conv weight is the
    # same 0/1 cross for every input channel (and out_channels == 1), so
    # Js = cross_stencil(sum_c s_c).
    ssum = jnp.sum(s, axis=1, keepdims=True)         # (B, 1, HW), exact (+-1 sums)

    # Doubled copy along the lane axis: every circular shift of ssum becomes a
    # static (possibly unaligned) lane slice of ss2 -- no padded HBM array.
    ss2 = jnp.concatenate([ssum, ssum], axis=-1)     # (B, 1, 2*HW)

    def shifted(k):
        # == jnp.roll(ssum, k, axis=-1):  out[p] = ssum[(p - k) mod HW]
        start = (HW - k) % HW                        # static Python int
        return ss2[:, :, start:start + HW]

    # Column index (w) of every flattened lane position p = h*W + w.
    wcol = jax.lax.broadcasted_iota(jnp.int32, (1, 1, HW), 2) % W

    js = jnp.zeros_like(ssum)
    for d in range(1, radius + 1):
        # Neighbours along H (outer axis of the flattened H*W): exact flat
        # shifts by +-d*W (the H wrap coincides with the flat wrap).
        js = js + shifted(d * W) + shifted(-d * W)
        # Neighbours along W (inner axis): flat shifts by +-d plus a fix-up at
        # the first/last d columns of each row where the flat shift would leak
        # into the neighbouring row.
        left = jnp.where(wcol < d, shifted(d - W), shifted(d))        # w - d
        right = jnp.where(wcol >= W - d, shifted(W - d), shifted(-d))  # w + d
        js = js + left + right

    delta_e = 2.0 * s * js                           # (B, C, HW), sublane bcast of js

    # p == 1 where delta_e <= 0, exp(-beta*delta_e) otherwise (no inf produced).
    p = jnp.exp(-beta * jnp.maximum(delta_e, 0.0))

    accept = jnp.logical_and(rand_ref[...] < p, drop_ref[...] > 0.5)
    o_ref[...] = jnp.where(accept, -s, s)


def rule_forward(x, rand, drop_rand, *, channels, beta, radius):
    """JAX/Pallas equivalent of Rule.forward(x) (return_E=False)."""
    s = x[:, :channels]                              # (B, C, H, W)
    B, C, H, W = s.shape
    HW = H * W

    # Contiguous (free) reshapes to a lane-dense layout: last dim = H*W.
    s_f = s.reshape(B, C, HW)
    r_f = rand[:, :channels].reshape(B, C, HW)
    d_f = drop_rand.reshape(1, 1, HW)

    kernel = functools.partial(
        _rule_kernel, beta=float(beta), radius=int(radius), H=H, W=W)

    out_f = pl.pallas_call(
        kernel,
        out_shape=jax.ShapeDtypeStruct((B, C, HW), s.dtype),
        grid=(1,),                                   # single step: whole batch
        in_specs=[
            pl.BlockSpec((B, C, HW), lambda i: (0, 0, 0)),
            pl.BlockSpec((B, C, HW), lambda i: (0, 0, 0)),
            pl.BlockSpec((1, 1, HW), lambda i: (0, 0, 0)),
        ],
        out_specs=pl.BlockSpec((B, C, HW), lambda i: (0, 0, 0)),
        compiler_params=pltpu.CompilerParams(
            dimension_semantics=("arbitrary",)),
        cost_estimate=pl.CostEstimate(
            flops=14 * B * C * HW,
            transcendentals=B * C * HW,
            bytes_accessed=4 * (3 * B * C * HW + HW)),
    )(s_f, r_f, d_f)

    return out_f.reshape(B, C, H, W)


def rule_reference(x, rand, drop_rand, *, channels, beta, radius):
    """Pure-JAX reference (same math, same randoms) for validation."""
    s = x[:, :channels]
    ssum = jnp.sum(s, axis=1, keepdims=True)
    js = jnp.zeros_like(ssum)
    for d in range(1, radius + 1):
        js = js + jnp.roll(ssum, d, axis=2) + jnp.roll(ssum, -d, axis=2)
        js = js + jnp.roll(ssum, d, axis=3) + jnp.roll(ssum, -d, axis=3)
    delta_e = 2.0 * s * js
    p = jnp.where(delta_e <= 0.0, jnp.ones_like(delta_e), jnp.exp(-delta_e * beta))
    accept = jnp.logical_and(rand[:, :channels] < p, drop_rand > 0.5)
    return jnp.where(accept, -s, s)


if __name__ == "__main__":
    BETA = 1.0
    CHANNELS = 4
    RADIUS = 1
    B, H, W = 2, 16, 16

    key = jax.random.PRNGKey(0)
    k1, k2, k3 = jax.random.split(key, 3)
    # Ising spins in {-1, +1}
    x = jnp.where(jax.random.uniform(k1, (B, CHANNELS, H, W)) > 0.5, 1.0, -1.0
                  ).astype(jnp.float32)
    # torch.rand_like(s) / torch.rand_like(s[0,0]) equivalents (uniform [0,1))
    rand = jax.random.uniform(k2, (B, CHANNELS, H, W), dtype=jnp.float32)
    drop_rand = jax.random.uniform(k3, (1, 1, H, W), dtype=jnp.float32)

    out = rule_forward(x, rand, drop_rand, channels=CHANNELS, beta=BETA,
                       radius=RADIUS)
    out = jax.block_until_ready(out)

    ref = rule_reference(x, rand, drop_rand, channels=CHANNELS, beta=BETA,
                         radius=RADIUS)
    assert out.shape == (B, CHANNELS, H, W)
    assert bool(jnp.allclose(out, ref, atol=1e-6)), "kernel mismatch vs reference"

    print("KERNEL_OK")
</pallas_src>

<mosaic_0001>
module attributes {stable_mosaic.version = 11 : i64} {
  func.func @_rule_kernel(%arg0: i32, %arg1: memref<2x4x256xf32, #tpu.memory_space<vmem>>, %arg2: memref<2x4x256xf32, #tpu.memory_space<vmem>>, %arg3: memref<1x1x256xf32, #tpu.memory_space<vmem>>, %arg4: memref<2x4x256xf32, #tpu.memory_space<vmem>>) attributes {dimension_semantics = [#tpu.dimension_semantics<arbitrary>], iteration_bounds = array<i64: 1>, scalar_prefetch = 0 : i64, scratch_operands = 0 : i64, tpu.core_type = #tpu.core_type<tc>, window_params = [{pipeline_mode = #tpu.pipeline_mode<synchronous>, transform_indices = @transform_0, window_bounds = array<i64: 2, 4, 256>}, {pipeline_mode = #tpu.pipeline_mode<synchronous>, transform_indices = @transform_1, window_bounds = array<i64: 2, 4, 256>}, {pipeline_mode = #tpu.pipeline_mode<synchronous>, transform_indices = @transform_2, window_bounds = array<i64: 1, 1, 256>}, {pipeline_mode = #tpu.pipeline_mode<synchronous>, transform_indices = @transform_3, window_bounds = array<i64: 2, 4, 256>}]} {
    %c0 = arith.constant 0 : index
    %c0_0 = arith.constant 0 : index
    %c0_1 = arith.constant 0 : index
    %0 = vector.load %arg1[%c0, %c0_0, %c0_1] : memref<2x4x256xf32, #tpu.memory_space<vmem>>, vector<2x4x256xf32>
    %cst = arith.constant dense<0.000000e+00> : vector<2x256xf32>
    %1 = vector.multi_reduction <add>, %0, %cst [1] : vector<2x4x256xf32> to vector<2x256xf32>
    %2 = vector.shape_cast %1 : vector<2x256xf32> to vector<2x1x256xf32>
    %3 = tpu.concatenate %2, %2 in 2 : vector<2x1x256xf32>, vector<2x1x256xf32> -> vector<2x1x512xf32>
    %4 = tpu.iota {dimensions = array<i32: 2>} : vector<1x1x256xi32>
    %c16_i32 = arith.constant 16 : i32
    %c0_i32 = arith.constant 0 : i32
    %5 = arith.cmpi eq, %c16_i32, %c0_i32 : i32
    %c1_i32 = arith.constant 1 : i32
    %6 = arith.select %5, %c1_i32, %c16_i32 : i32
    %7 = vector.broadcast %6 : i32 to vector<1x1x256xi32>
    %8 = arith.remsi %4, %7 : vector<1x1x256xi32>
    %c0_i32_2 = arith.constant 0 : i32
    %9 = vector.broadcast %c0_i32_2 : i32 to vector<1x1x256xi32>
    %10 = arith.cmpi ne, %8, %9 : vector<1x1x256xi32>
    %c0_i32_3 = arith.constant 0 : i32
    %11 = vector.broadcast %c0_i32_3 : i32 to vector<1x1x256xi32>
    %12 = arith.cmpi slt, %8, %11 : vector<1x1x256xi32>
    %c0_i32_4 = arith.constant 0 : i32
    %13 = arith.cmpi slt, %6, %c0_i32_4 : i32
    %14 = vector.broadcast %13 : i1 to vector<1x1x256xi1>
    %15 = vector.broadcast %14 : vector<1x1x256xi1> to vector<1x1x256xi1>
    %16 = arith.xori %12, %15 : vector<1x1x256xi1>
    %17 = arith.andi %16, %10 : vector<1x1x256xi1>
    %18 = vector.broadcast %6 : i32 to vector<1x1x256xi32>
    %19 = arith.addi %8, %18 : vector<1x1x256xi32>
    %20 = arith.select %17, %19, %8 : vector<1x1x256xi1>, vector<1x1x256xi32>
    %cst_5 = arith.constant 0.000000e+00 : f32
    %21 = vector.broadcast %cst_5 : f32 to vector<2x1x256xf32>
    %22 = vector.extract_strided_slice %3 {offsets = [0, 0, 240], sizes = [2, 1, 256], strides = [1, 1, 1]} : vector<2x1x512xf32> to vector<2x1x256xf32>
    %23 = arith.addf %21, %22 : vector<2x1x256xf32>
    %24 = vector.extract_strided_slice %3 {offsets = [0, 0, 16], sizes = [2, 1, 256], strides = [1, 1, 1]} : vector<2x1x512xf32> to vector<2x1x256xf32>
    %25 = arith.addf %23, %24 : vector<2x1x256xf32>
    %c1_i32_6 = arith.constant 1 : i32
    %26 = vector.broadcast %c1_i32_6 : i32 to vector<1x1x256xi32>
    %27 = arith.cmpi slt, %20, %26 : vector<1x1x256xi32>
    %28 = vector.extract_strided_slice %3 {offsets = [0, 0, 15], sizes = [2, 1, 256], strides = [1, 1, 1]} : vector<2x1x512xf32> to vector<2x1x256xf32>
    %29 = vector.extract_strided_slice %3 {offsets = [0, 0, 255], sizes = [2, 1, 256], strides = [1, 1, 1]} : vector<2x1x512xf32> to vector<2x1x256xf32>
    %30 = vector.shape_cast %27 : vector<1x1x256xi1> to vector<1x1x256xi1>
    %31 = vector.broadcast %30 : vector<1x1x256xi1> to vector<2x1x256xi1>
    %32 = arith.select %31, %28, %29 : vector<2x1x256xi1>, vector<2x1x256xf32>
    %c15_i32 = arith.constant 15 : i32
    %33 = vector.broadcast %c15_i32 : i32 to vector<1x1x256xi32>
    %34 = arith.cmpi sge, %20, %33 : vector<1x1x256xi32>
    %35 = vector.extract_strided_slice %3 {offsets = [0, 0, 241], sizes = [2, 1, 256], strides = [1, 1, 1]} : vector<2x1x512xf32> to vector<2x1x256xf32>
    %36 = vector.extract_strided_slice %3 {offsets = [0, 0, 1], sizes = [2, 1, 256], strides = [1, 1, 1]} : vector<2x1x512xf32> to vector<2x1x256xf32>
    %37 = vector.shape_cast %34 : vector<1x1x256xi1> to vector<1x1x256xi1>
    %38 = vector.broadcast %37 : vector<1x1x256xi1> to vector<2x1x256xi1>
    %39 = arith.select %38, %35, %36 : vector<2x1x256xi1>, vector<2x1x256xf32>
    %40 = arith.addf %25, %32 : vector<2x1x256xf32>
    %41 = arith.addf %40, %39 : vector<2x1x256xf32>
    %cst_7 = arith.constant 2.000000e+00 : f32
    %42 = vector.broadcast %cst_7 : f32 to vector<2x4x256xf32>
    %43 = arith.mulf %42, %0 : vector<2x4x256xf32>
    %44 = vector.broadcast %41 : vector<2x1x256xf32> to vector<2x4x256xf32>
    %45 = arith.mulf %43, %44 : vector<2x4x256xf32>
    %cst_8 = arith.constant 0.000000e+00 : f32
    %46 = vector.broadcast %cst_8 : f32 to vector<2x4x256xf32>
    %47 = arith.maximumf %45, %46 : vector<2x4x256xf32>
    %cst_9 = arith.constant -1.000000e+00 : f32
    %48 = vector.broadcast %cst_9 : f32 to vector<2x4x256xf32>
    %49 = arith.mulf %48, %47 : vector<2x4x256xf32>
    %50 = math.exp %49 : vector<2x4x256xf32>
    %c0_10 = arith.constant 0 : index
    %c0_11 = arith.constant 0 : index
    %c0_12 = arith.constant 0 : index
    %51 = vector.load %arg2[%c0_10, %c0_11, %c0_12] : memref<2x4x256xf32, #tpu.memory_space<vmem>>, vector<2x4x256xf32>
    %52 = arith.cmpf olt, %51, %50 : vector<2x4x256xf32>
    %c0_13 = arith.constant 0 : index
    %c0_14 = arith.constant 0 : index
    %c0_15 = arith.constant 0 : index
    %53 = vector.load %arg3[%c0_13, %c0_14, %c0_15] : memref<1x1x256xf32, #tpu.memory_space<vmem>>, vector<1x1x256xf32>
    %cst_16 = arith.constant 5.000000e-01 : f32
    %54 = vector.broadcast %cst_16 : f32 to vector<1x1x256xf32>
    %55 = arith.cmpf ogt, %53, %54 : vector<1x1x256xf32>
    %56 = vector.broadcast %55 : vector<1x1x256xi1> to vector<2x4x256xi1>
    %57 = arith.andi %52, %56 : vector<2x4x256xi1>
    %cst_17 = arith.constant 0.000000e+00 : f32
    %58 = vector.broadcast %cst_17 : f32 to vector<2x4x256xf32>
    %59 = arith.subf %58, %0 : vector<2x4x256xf32>
    %60 = arith.select %57, %59, %0 : vector<2x4x256xi1>, vector<2x4x256xf32>
    %c0_18 = arith.constant 0 : index
    %c0_19 = arith.constant 0 : index
    %c0_20 = arith.constant 0 : index
    %61 = vector.load %arg4[%c0_18, %c0_19, %c0_20] : memref<2x4x256xf32, #tpu.memory_space<vmem>>, vector<2x4x256xf32>
    tpu.vector_store %arg4[%c0_18, %c0_19, %c0_20], %60 {strides = array<i32>} : memref<2x4x256xf32, #tpu.memory_space<vmem>>, vector<2x4x256xf32>,
    return
  }
  func.func @transform_0(%arg0: i32) -> (i32, i32, i32) {
    %c0_i32 = arith.constant 0 : i32
    %c0_i32_0 = arith.constant 0 : i32
    %c0_i32_1 = arith.constant 0 : i32
    %c0_i32_2 = arith.constant 0 : i32
    return %c0_i32, %c0_i32_0, %c0_i32_1 : i32, i32, i32
  }
  func.func @transform_1(%arg0: i32) -> (i32, i32, i32) {
    %c0_i32 = arith.constant 0 : i32
    %c0_i32_0 = arith.constant 0 : i32
    %c0_i32_1 = arith.constant 0 : i32
    %c0_i32_2 = arith.constant 0 : i32
    return %c0_i32, %c0_i32_0, %c0_i32_1 : i32, i32, i32
  }
  func.func @transform_2(%arg0: i32) -> (i32, i32, i32) {
    %c0_i32 = arith.constant 0 : i32
    %c0_i32_0 = arith.constant 0 : i32
    %c0_i32_1 = arith.constant 0 : i32
    %c0_i32_2 = arith.constant 0 : i32
    return %c0_i32, %c0_i32_0, %c0_i32_1 : i32, i32, i32
  }
  func.func @transform_3(%arg0: i32) -> (i32, i32, i32) {
    %c0_i32 = arith.constant 0 : i32
    %c0_i32_0 = arith.constant 0 : i32
    %c0_i32_1 = arith.constant 0 : i32
    %c0_i32_2 = arith.constant 0 : i32
    return %c0_i32, %c0_i32_0, %c0_i32_1 : i32, i32, i32
  }
}

</mosaic_0001>

<llo_original>
// kernel: tpu_custom_call.1
$region0: #{tpu_custom_call.1}
  #allocation0 [shape = 'u32[]', space=smem, size = 0x4, offset = 0x4, fixed_abs, tag = 'smem constant byte address 0x4 - core index']
  #allocation1 [shape = 'u32[72,128]{1,0:T(1,128)}', space=vmem, size = 0x9000, scoped, tag = 'internal scratch']
  %s0 = inlined_call_operand.hbm [shape: f32[2,4,256], index: 0, kind: input, shape index: {}]
  %s1 = inlined_call_operand.hbm [shape: f32[2,4,256], index: 1, kind: input, shape index: {}]
  %s2 = inlined_call_operand.hbm [shape: f32[1,1,256], index: 2, kind: input, shape index: {}]
  %s3 = inlined_call_operand.hbm [shape: f32[2,4,256], index: 3, kind: output, shape index: {}]
  %s4 = sld [smem:[#allocation0]]
  $region34: #{tpu_custom_call.1} parent=0
    _
  %s6 = ssub.s32 1, %s4
  %s7 = scalar_select 0, %s6, %s4
  $region1: #{tpu_custom_call.1} parent=0
    #allocation2 [shape = 'u8[8192]{0}', space=vmem, size = 0x2000, scoped, tag = 'input window, operand 0, single buffered']
    #allocation3 [shape = 's32[1]{0}', space=sflag, size = 0x4, scoped, tag = 'scoped memory for tpu_custom_call.1']
    #allocation4 [shape = 's32[1]{0}', space=sflag, size = 0x4, scoped, tag = 'scoped memory for tpu_custom_call.1']
    #allocation5 [shape = 'u8[8192]{0}', space=vmem, size = 0x2000, scoped, tag = 'input window, operand 1, single buffered']
    #allocation6 [shape = 's32[1]{0}', space=sflag, size = 0x4, scoped, tag = 'scoped memory for tpu_custom_call.1']
    #allocation7 [shape = 'u8[1024]{0}', space=vmem, size = 0x400, scoped, tag = 'input window, operand 2, single buffered']
    #allocation8 [shape = 'u8[8192]{0}', space=vmem, size = 0x2000, scoped, tag = 'output window, operand 0, single buffered']
    %8 = vsyncpa [#allocation3], 0
    %9 = vsyncpa [#allocation6], 0
    %10 = vsyncpa [#allocation4], 0
    // Predicated region
    $region2: #{tpu_custom_call.1} parent=1 // pred_check
      _
    $region3: #{tpu_custom_call.1} parent=1 // pred_check_branch
      %12 = sbr.rel (0) target = $region5
    $region4: #{tpu_custom_call.1} parent=1 // pred_region
      %14 = vsyncadd [#allocation3], 0
      %s15 = sshll.u32 %s0, 4
      %s16 = int_to_ptr.hbm [resolvable:$true] %s15
      %s17 = sshll.u32 [#allocation2], 4
      %s18 = int_to_ptr.vmem [resolvable:$true] %s17
      %23 = dma.hbm_to_vmem [thread:$0]  %s16, 256, %s18, [#allocation3], 128, 128, 8
    $region5: #{tpu_custom_call.1} parent=1 // pred_fallthru
      _
    // Predicated region
    $region6: #{tpu_custom_call.1} parent=1 // pred_check
      _
    $region7: #{tpu_custom_call.1} parent=1 // pred_check_branch
      %25 = sbr.rel (0) target = $region9
    $region8: #{tpu_custom_call.1} parent=1 // pred_region
      %27 = vsyncadd [#allocation6], 0
      %s28 = sshll.u32 %s1, 4
      %s29 = int_to_ptr.hbm [resolvable:$true] %s28
      %s30 = sshll.u32 [#allocation5], 4
      %s31 = int_to_ptr.vmem [resolvable:$true] %s30
      %36 = dma.hbm_to_vmem [thread:$0]  %s29, 256, %s31, [#allocation6], 128, 128, 8
    $region9: #{tpu_custom_call.1} parent=1 // pred_fallthru
      _
    // Predicated region
    $region10: #{tpu_custom_call.1} parent=1 // pred_check
      _
    $region11: #{tpu_custom_call.1} parent=1 // pred_check_branch
      %38 = sbr.rel (0) target = $region13
    $region12: #{tpu_custom_call.1} parent=1 // pred_region
      %40 = vsyncadd [#allocation6], 0
      %s42 = sshll.u32 %s2, 4
      %s43 = int_to_ptr.hbm [resolvable:$true] %s42
      %s44 = sshll.u32 [#allocation7], 4
      %s45 = int_to_ptr.vmem [resolvable:$true] %s44
      %47 = dma.hbm_to_vmem [thread:$0]  %s43, 32, %s45, [#allocation6]
    $region13: #{tpu_custom_call.1} parent=1 // pred_fallthru
      _
    // Predicated region
    $region14: #{tpu_custom_call.1} parent=1 // pred_check
      _
    $region15: #{tpu_custom_call.1} parent=1 // pred_check_branch
      %49 = sbr.rel (0) target = $region17
    $region16: #{tpu_custom_call.1} parent=1 // pred_region
      %51 = dma.done [#allocation3], 256
    $region17: #{tpu_custom_call.1} parent=1 // pred_fallthru
      _
    // Predicated region
    $region18: #{tpu_custom_call.1} parent=1 // pred_check
      _
    $region19: #{tpu_custom_call.1} parent=1 // pred_check_branch
      %53 = sbr.rel (0) target = $region21
    $region20: #{tpu_custom_call.1} parent=1 // pred_region
      %55 = dma.done [#allocation6], 256
    $region21: #{tpu_custom_call.1} parent=1 // pred_fallthru
      _
    // Predicated region
    $region22: #{tpu_custom_call.1} parent=1 // pred_check
      _
    $region23: #{tpu_custom_call.1} parent=1 // pred_check_branch
      %57 = sbr.rel (0) target = $region25
    $region24: #{tpu_custom_call.1} parent=1 // pred_region
      %59 = dma.done [#allocation6], 32
    $region25: #{tpu_custom_call.1} parent=1 // pred_fallthru
      _
    %v60 = vld [vmem:[#allocation2] sm:$0xff]
    %v61 = vld [vmem:[#allocation2 + $0x8] sm:$0xff]
    %64 = vst [vmem:[#allocation1] ss:$2 sm:$0xff] %v60
    %v65 = vld.sshfl [vmem:[#allocation1] sm:$0xff pattern:$0x75316420]
    %v66 = vld.sshfl [vmem:[#allocation1 + $0x8] sm:$0xff pattern:$0x75316420]
    %s67 = scalar_lea.vmem [#allocation1], 16
    %68 = vst [vmem:[%s67] ss:$2 sm:$0xff] %v61
    %v69 = vld.sshfl [vmem:[#allocation1 + $0x10] sm:$0xff pattern:$0x75316420]
    %v70 = vld.sshfl [vmem:[#allocation1 + $0x18] sm:$0xff pattern:$0x75316420]
    %vm75 = vcmask 1043456
    %v76 = vsel %vm75, %v65, 0.0
    %v77 = vrot.slane %v76, 4
    %v78 = vadd.f32 %v76, %v77
    %v79 = vrot.slane %v78, 2
    %v80 = vadd.f32 %v78, %v79
    %v81 = vrot.slane %v80, 1
    %v82 = vadd.f32 %v80, %v81
    %v83 = vsel %vm75, %v66, 0.0
    %v84 = vrot.slane %v83, 4
    %v85 = vadd.f32 %v83, %v84
    %v86 = vrot.slane %v85, 2
    %v87 = vadd.f32 %v85, %v86
    %v88 = vrot.slane %v87, 1
    %v89 = vadd.f32 %v87, %v88
    %v90 = vsel %vm75, %v69, 0.0
    %v91 = vrot.slane %v90, 4
    %v92 = vadd.f32 %v90, %v91
    %v93 = vrot.slane %v92, 2
    %v94 = vadd.f32 %v92, %v93
    %v95 = vrot.slane %v94, 1
    %v96 = vadd.f32 %v94, %v95
    %v97 = vsel %vm75, %v70, 0.0
    %v98 = vrot.slane %v97, 4
    %v99 = vadd.f32 %v97, %v98
    %v100 = vrot.slane %v99, 2
    %v101 = vadd.f32 %v99, %v100
    %v102 = vrot.slane %v101, 1
    %v103 = vadd.f32 %v101, %v102
    %v104 = vlaneseq
    %v105 = vand.u32 %v104, 127
    %v106 = vadd.s32 %v105, 128
    %vm107 = vcmp.lt.s32.totalorder %v105, 0
    %v108 = vsub.s32 0, %v105
    %v109 = vsel %vm107, %v108, %v105
    %v110 = vshrl.u32 %v109, 4
    %v111 = vand.u32 %v109, 15
    %v112 = vsub.s32 0, %v111
    %v113 = vsel %vm107, %v112, %v111
    %vm114 = vcmp.lt.s32.totalorder %v106, 0
    %v115 = vsub.s32 0, %v106
    %v116 = vsel %vm114, %v115, %v106
    %v117 = vshrl.u32 %v116, 4
    %v118 = vand.u32 %v116, 15
    %v119 = vsub.s32 0, %v118
    %v120 = vsel %vm114, %v119, %v118
    %vm121 = vcmp.ne.s32.totalorder %v113, 0
    %vm122 = vcmp.ne.s32.totalorder %v120, 0
    %vm123 = vcmp.lt.s32.totalorder %v113, 0
    %vm124 = vcmp.lt.s32.totalorder %v120, 0
    %vm125 = vmand %vm123, %vm121
    %vm126 = vmand %vm124, %vm122
    %v127 = vadd.s32 %v113, 16
    %v128 = vadd.s32 %v120, 16
    %v129 = vsel %vm125, %v127, %v113
    %v130 = vsel %vm126, %v128, %v120
    %v131 = vadd.f32 %v89, 0.0
    %v132 = vadd.f32 %v82, 0.0
    %v133 = vadd.f32 %v103, 0.0
    %v134 = vadd.f32 %v96, 0.0
    %139 = vrot.lane.b32.xlu0 %v82, 96
    %v140 = vpop.permute.xlu0 %139
    %141 = vrot.lane.b32.xlu0 %v89, 96
    %v142 = vpop.permute.xlu0 %141
    %143 = vrot.lane.b32.xlu0 %v96, 96
    %v144 = vpop.permute.xlu0 %143
    %145 = vrot.lane.b32.xlu0 %v103, 96
    %v146 = vpop.permute.xlu0 %145
    %vm147 = vcmask 785408
    %v148 = vsel %vm147, %v140, %v142
    %v149 = vsel %vm147, %v142, %v140
    %v150 = vsel %vm147, %v144, %v146
    %v151 = vsel %vm147, %v146, %v144
    %v158 = vadd.f32 %v131, %v140
    %v159 = vadd.f32 %v132, %v148
    %v160 = vadd.f32 %v131, %v149
    %v161 = vadd.f32 %v133, %v144
    %v162 = vadd.f32 %v134, %v150
    %v163 = vadd.f32 %v133, %v151
    %vm164 = vcmp.lt.s32.totalorder %v129, 1
    %vm165 = vcmp.lt.s32.totalorder %v130, 1
    %v166 = vsel %vm164, 1, 0
    %v167 = vsel %vm165, 1, 0
    %vm168 = vcmp.eq.s32.totalorder %v166, 1
    %vm169 = vcmp.eq.s32.totalorder %v167, 1
    %170 = vrot.lane.b32.xlu0 %v82, 113
    %v171 = vpop.permute.xlu0 %170
    %172 = vrot.lane.b32.xlu0 %v89, 113
    %v173 = vpop.permute.xlu0 %172
    %174 = vrot.lane.b32.xlu0 %v96, 113
    %v175 = vpop.permute.xlu0 %174
    %176 = vrot.lane.b32.xlu0 %v103, 113
    %v177 = vpop.permute.xlu0 %176
    %vm178 = vcmask 924672
    %v179 = vsel %vm178, %v171, %v173
    %v180 = vsel %vm178, %v173, %v171
    %v181 = vsel %vm178, %v175, %v177
    %v182 = vsel %vm178, %v177, %v175
    %187 = vrot.lane.b32.xlu0 %v89, 1
    %v188 = vpop.permute.xlu0 %187
    %189 = vrot.lane.b32.xlu0 %v82, 1
    %v190 = vpop.permute.xlu0 %189
    %191 = vrot.lane.b32.xlu0 %v103, 1
    %v192 = vpop.permute.xlu0 %191
    %193 = vrot.lane.b32.xlu0 %v96, 1
    %v194 = vpop.permute.xlu0 %193
    %vm195 = vcmask 7168
    %v196 = vsel %vm195, %v188, %v190
    %v197 = vsel %vm195, %v190, %v188
    %v198 = vsel %vm195, %v192, %v194
    %v199 = vsel %vm195, %v194, %v192
    %v204 = vsel %vm168, %v179, %v196
    %v205 = vsel %vm169, %v180, %v197
    %v206 = vsel %vm168, %v181, %v198
    %v207 = vsel %vm169, %v182, %v199
    %vm208 = vcmp.ge.s32.totalorder %v129, 15
    %vm209 = vcmp.ge.s32.totalorder %v130, 15
    %v210 = vsel %vm208, 1, 0
    %v211 = vsel %vm209, 1, 0
    %vm212 = vcmp.eq.s32.totalorder %v210, 1
    %vm213 = vcmp.eq.s32.totalorder %v211, 1
    %214 = vrot.lane.b32.xlu0 %v89, 15
    %v215 = vpop.permute.xlu0 %214
    %216 = vrot.lane.b32.xlu0 %v82, 15
    %v217 = vpop.permute.xlu0 %216
    %218 = vrot.lane.b32.xlu0 %v103, 15
    %v219 = vpop.permute.xlu0 %218
    %220 = vrot.lane.b32.xlu0 %v96, 15
    %v221 = vpop.permute.xlu0 %220
    %vm222 = vcmask 121856
    %v223 = vsel %vm222, %v215, %v217
    %v224 = vsel %vm222, %v217, %v215
    %v225 = vsel %vm222, %v219, %v221
    %v226 = vsel %vm222, %v221, %v219
    %231 = vrot.lane.b32.xlu0 %v82, 127
    %v232 = vpop.permute.xlu0 %231
    %233 = vrot.lane.b32.xlu0 %v89, 127
    %v234 = vpop.permute.xlu0 %233
    %235 = vrot.lane.b32.xlu0 %v96, 127
    %v236 = vpop.permute.xlu0 %235
    %237 = vrot.lane.b32.xlu0 %v103, 127
    %v238 = vpop.permute.xlu0 %237
    %vm239 = vcmask 1039360
    %v240 = vsel %vm239, %v232, %v234
    %v241 = vsel %vm239, %v234, %v232
    %v242 = vsel %vm239, %v236, %v238
    %v243 = vsel %vm239, %v238, %v236
    %v248 = vsel %vm212, %v223, %v240
    %v249 = vsel %vm213, %v224, %v241
    %v250 = vsel %vm212, %v225, %v242
    %v251 = vsel %vm213, %v226, %v243
    %256 = vrot.lane.b32.xlu0 %v204, 112
    %v257 = vpop.permute.xlu0 %256
    %258 = vrot.lane.b32.xlu0 %v205, 112
    %v259 = vpop.permute.xlu0 %258
    %260 = vrot.lane.b32.xlu0 %v206, 112
    %v261 = vpop.permute.xlu0 %260
    %262 = vrot.lane.b32.xlu0 %v207, 112
    %v263 = vpop.permute.xlu0 %262
    %vm264 = vcmask 916480
    %v265 = vsel %vm264, %v257, %v259
    %v266 = vsel %vm264, %v261, %v263
    %v273 = vadd.f32 %v158, %v257
    %v274 = vadd.f32 %v159, %v265
    %v275 = vadd.f32 %v160, %v259
    %v276 = vadd.f32 %v161, %v261
    %v277 = vadd.f32 %v162, %v266
    %v278 = vadd.f32 %v163, %v263
    %283 = vrot.lane.b32.xlu0 %v248, 112
    %v284 = vpop.permute.xlu0 %283
    %285 = vrot.lane.b32.xlu0 %v249, 112
    %v286 = vpop.permute.xlu0 %285
    %287 = vrot.lane.b32.xlu0 %v250, 112
    %v288 = vpop.permute.xlu0 %287
    %289 = vrot.lane.b32.xlu0 %v251, 112
    %v290 = vpop.permute.xlu0 %289
    %v291 = vsel %vm264, %v284, %v286
    %v292 = vsel %vm264, %v288, %v290
    %v299 = vadd.f32 %v273, %v284
    %v300 = vadd.f32 %v274, %v291
    %v301 = vadd.f32 %v275, %v286
    %v302 = vadd.f32 %v276, %v288
    %v303 = vadd.f32 %v277, %v292
    %v304 = vadd.f32 %v278, %v290
    %v305 = vmul.f32 %v60, 2.0
    %v306 = vmul.f32 %v61, 2.0
    %v307 = vperm.slane %v299, 0
    %v308 = vperm.slane %v300, 0
    %v309 = vperm.slane %v301, 0
    %v310 = vperm.slane %v302, 0
    %v311 = vperm.slane %v303, 0
    %v312 = vperm.slane %v304, 0
    %v319 = vrot.slane %v308, 4
    %v320 = vrot.slane %v311, 4
    %v321 = vsel %vm75, %v307, %v319
    %v322 = vsel %vm75, %v310, %v320
    %323 = vrot.lane.b32.xlu0 %v321, 16
    %v324 = vpop.permute.xlu0 %323
    %325 = vrot.lane.b32.xlu0 %v309, 16
    %v326 = vpop.permute.xlu0 %325
    %327 = vrot.lane.b32.xlu0 %v322, 16
    %v328 = vpop.permute.xlu0 %327
    %329 = vrot.lane.b32.xlu0 %v312, 16
    %v330 = vpop.permute.xlu0 %329
    %v331 = vrot.slane %v324, 4
    %v332 = vrot.slane %v326, 4
    %v333 = vrot.slane %v328, 4
    %v334 = vrot.slane %v330, 4
    %v335 = vsel %vm75, %v331, %v332
    %vm336 = vcmask 130048
    %v337 = vsel %vm336, %v324, %v335
    %v338 = vsel %vm75, %v333, %v334
    %v339 = vsel %vm336, %v328, %v338
    %v342 = vmul.f32 %v305, %v337
    %v343 = vmul.f32 %v306, %v339
    %v344 = vmax.f32 %v342, 0.0
    %v345 = vmax.f32 %v343, 0.0
    %v346 = vmul.f32 %v344, -1.0
    %v347 = vmul.f32 %v345, -1.0
    %v348 = vmul.f32 %v346, 1.442695
    %v349 = vpow.pop %v348
    %v350 = vmul.f32 %v347, 1.442695
    %v351 = vpow.pop %v350
    %v352 = vld [vmem:[#allocation5] sm:$0xff]
    %v353 = vld [vmem:[#allocation5 + $0x8] sm:$0xff]
    %vm354 = vcmp.lt.f32.partialorder %v352, %v349
    %vm355 = vcmp.lt.f32.partialorder %v353, %v351
    %v356 = vld [vmem:[#allocation7] sm:$0x3]
    %vm357 = vcmp.gt.f32.partialorder %v356, 0.5
    %v358 = vsel %vm357, 1, 0
    %v359 = vperm.slane %v358, 0
    %v360 = vperm.slane %v358, 1
    %vm361 = vcmp.eq.s32.totalorder %v359, 1
    %vm362 = vcmp.eq.s32.totalorder %v360, 1
    %v363 = vsel %vm361, 1, 0
    %v364 = vsel %vm362, 1, 0
    %v365 = vrot.slane %v364, 4
    %v366 = vsel %vm75, %v363, %v365
    %vm367 = vcmp.ne.s32.totalorder %v366, 0
    %vm368 = vmand %vm354, %vm367
    %vm369 = vmand %vm355, %vm367
    %v370 = vsub.f32 0.0, %v60
    %v371 = vsub.f32 0.0, %v61
    %v372 = vsel %vm368, %v370, %v60
    %v373 = vsel %vm369, %v371, %v61
    %374 = vst [vmem:[#allocation8] sm:$0xff] %v372
    %375 = vst [vmem:[#allocation8 + $0x8] sm:$0xff] %v373
    // Predicated region
    $region26: #{tpu_custom_call.1} parent=1 // pred_check
      _
    $region27: #{tpu_custom_call.1} parent=1 // pred_check_branch
      %377 = sbr.rel (0) target = $region29
    $region28: #{tpu_custom_call.1} parent=1 // pred_region
      %379 = vsyncadd [#allocation4], 0
      %s380 = sshll.u32 [#allocation8], 4
      %s381 = int_to_ptr.vmem [resolvable:$true] %s380
      %s382 = sshll.u32 %s3, 4
      %s383 = int_to_ptr.hbm [resolvable:$true] %s382
      %388 = dma.vmem_to_hbm [thread:$0]  %s381, 256, %s383, [#allocation4], 128, 128, 8
    $region29: #{tpu_custom_call.1} parent=1 // pred_fallthru
      _
    // Predicated region
    $region30: #{tpu_custom_call.1} parent=1 // pred_check
      _
    $region31: #{tpu_custom_call.1} parent=1 // pred_check_branch
      %390 = sbr.rel (0) target = $region33
    $region32: #{tpu_custom_call.1} parent=1 // pred_region
      %392 = dma.done [#allocation4], 256
    $region33: #{tpu_custom_call.1} parent=1 // pred_fallthru
      _
    %393 = vsyncpa [#allocation3], 1
    %394 = vsyncpa [#allocation6], 1
    %395 = vsyncpa [#allocation4], 1

</llo_original>
